<compile_context>
chip_gen: v7x
topology: tpu7x:2x2x1
jax: 0.10.0
libtpu: 0.0.40
codegen_flags: <defaults>
</compile_context>

<pallas_src>
import math
import functools

import jax
import jax.numpy as jnp
from jax.experimental import pallas as pl
from jax.experimental.pallas import tpu as pltpu


def _round_up(v, m):
    return -(-v // m) * m


def _cdiv(a, b):
    return -(-a // b)


def _vmem_capacity_bytes():
    try:
        return int(pltpu.get_tpu_info().vmem_capacity_bytes)
    except Exception:
        return 64 << 20  # conservative fallback: v7x per-TensorCore VMEM


def _add_pe_kernel(x_ref, pe_ref, o_ref, *, d_model, n_per_block):
    # x_ref / o_ref: (seq_tile, n_per_block * d_model); pe_ref: (seq_tile, d_model)
    # Chunked broadcast-add: one plain vadd + one store per output vreg,
    # no wide concatenated VMEM temp.
    pe = pe_ref[...]
    for n in range(n_per_block):
        lo = n * d_model
        o_ref[:, lo:lo + d_model] = x_ref[:, lo:lo + d_model] + pe


@functools.partial(jax.jit, static_argnames=("target_tile_bytes",))
def positional_encoding_lut(x, pos_embed_weight, *, target_tile_bytes=None):
    """Eval-mode forward of PositionalEncodingLUT.

    x: (S, N, D); pos_embed_weight: (max_len, D).
    Returns x + pos_embed_weight[:S][:, None, :].
    """
    S, N, D = x.shape
    max_len, d_w = pos_embed_weight.shape
    if d_w != D:
        raise ValueError(f"d_model mismatch: x has {D}, table has {d_w}")
    if S > max_len:
        raise ValueError(f"sequence length {S} exceeds max_len {max_len}")

    dtype = x.dtype
    itemsize = jnp.dtype(dtype).itemsize

    # Embedding "lookup" for positions [0, S) is a contiguous slice; cast once.
    # TODO(synk): if x is bf16 and the table is f32 this rounds pe before the
    #             add (PyTorch promotes then adds); difference is negligible.
    pe = pos_embed_weight[:S].astype(dtype)            # (S, D)

    # Lane-dense layout: merge (N, D) into one lane axis (contiguous view).
    x2 = x.reshape(S, N * D)

    # ---- generation-aware VMEM / tile budgets --------------------------------
    vmem_cap = _vmem_capacity_bytes()
    vmem_budget = min(vmem_cap * 3 // 4, 100 << 20)    # ~48 MiB (v7x), ~96 MiB (v5e/v6e)
    if target_tile_bytes is None:
        target_tile_bytes = (8 << 20) if vmem_cap <= (64 << 20) else (16 << 20)

    # Per-x-block ceiling: 2x in + 2x out double buffers must fit the budget
    # (leave headroom for pe's small double buffer + compiler scratch).
    max_block_bytes = max((vmem_budget - (4 << 20)) // 4, 1 << 20)

    # ---- batch (lane) tiling: only when even an 8-row tile is too large ------
    min_seq_rows = S if S <= 8 else 8
    nb = N
    if N > 1 and min_seq_rows * N * D * itemsize > max_block_bytes:
        nb0 = 128 // math.gcd(D, 128)        # smallest nb with (nb * D) % 128 == 0
        budget_nb = max_block_bytes // max(min_seq_rows * D * itemsize, 1)
        cand = (budget_nb // nb0) * nb0
        if nb0 <= cand < N:
            nb = cand
        # else: fall back to full batch extent (rare: huge D not a multiple of
        # 128); vmem_limit below is clamped to the budget regardless.
    grid_batch = _cdiv(N, nb)

    # ---- sequence (sublane) tiling --------------------------------------------
    block_row_bytes = nb * D * itemsize
    if S <= 8:
        seq_tile = S
    else:
        ideal_rows = max(8, target_tile_bytes // block_row_bytes)
        steps = max(2, _cdiv(S, ideal_rows))            # >= 2 steps for megacore
        if grid_batch == 1 and steps % 2 == 1:
            steps += 1                                   # even split over 2 TCs
        seq_tile = min(_round_up(_cdiv(S, steps), 8), _round_up(S, 8))
    grid_seq = _cdiv(S, seq_tile)

    grid = (grid_seq, grid_batch)

    tile_bytes = seq_tile * nb * D * itemsize
    pe_tile_bytes = seq_tile * D * itemsize
    vmem_need = 4 * tile_bytes + 2 * pe_tile_bytes + (2 << 20)
    vmem_limit = int(min(max(vmem_need, 32 << 20), vmem_budget))

    kernel = functools.partial(_add_pe_kernel, d_model=D, n_per_block=nb)

    cost = pl.CostEstimate(
        flops=S * N * D,
        transcendentals=0,
        bytes_accessed=2 * S * N * D * itemsize + S * D * itemsize,
    )

    out2 = pl.pallas_call(
        kernel,
        out_shape=jax.ShapeDtypeStruct((S, N * D), dtype),
        grid=grid,
        in_specs=[
            pl.BlockSpec((seq_tile, nb * D), lambda i, j: (i, j)),
            pl.BlockSpec((seq_tile, D), lambda i, j: (i, 0)),
        ],
        out_specs=pl.BlockSpec((seq_tile, nb * D), lambda i, j: (i, j)),
        compiler_params=pltpu.CompilerParams(
            dimension_semantics=("parallel", "parallel"),
            vmem_limit_bytes=vmem_limit,
        ),
        cost_estimate=cost,
    )(x2, pe)

    return out2.reshape(S, N, D)


if __name__ == "__main__":
    # Shapes consistent with the module's documented forward:
    #   d_model = 256, x: (60, 10, 256), max_len >= 60
    d_model = 256
    max_len = 64
    S, N = 60, 10

    key = jax.random.PRNGKey(0)
    k_x, k_w = jax.random.split(key)

    x = jax.random.normal(k_x, (S, N, d_model), dtype=jnp.float32)

    # Deterministic kaiming_normal_(mode='fan_in') init for nn.Embedding(max_len, d_model):
    # fan_in = d_model, gain = sqrt(2)  ->  std = sqrt(2 / d_model)
    std = math.sqrt(2.0 / d_model)
    pos_embed_weight = std * jax.random.normal(k_w, (max_len, d_model), dtype=jnp.float32)

    out = positional_encoding_lut(x, pos_embed_weight)
    out = jax.block_until_ready(out)

    # Reference check (pure JAX): x + pos_embed[:S][:, None, :]
    ref = x + pos_embed_weight[:S][:, None, :]
    assert out.shape == (S, N, d_model)
    assert jnp.allclose(out, ref, atol=1e-6, rtol=1e-6), float(
        jnp.max(jnp.abs(out - ref)))

    print("KERNEL_OK")
</pallas_src>

<mosaic_0001>
module attributes {stable_mosaic.version = 11 : i64} {
  func.func @_add_pe_kernel(%arg0: i32, %arg1: i32, %arg2: memref<32x2560xf32, #tpu.memory_space<vmem>>, %arg3: memref<32x256xf32, #tpu.memory_space<vmem>>, %arg4: memref<32x2560xf32, #tpu.memory_space<vmem>>) attributes {dimension_semantics = [#tpu.dimension_semantics<parallel>, #tpu.dimension_semantics<parallel>], iteration_bounds = array<i64: 2, 1>, scalar_prefetch = 0 : i64, scratch_operands = 0 : i64, tpu.core_type = #tpu.core_type<tc>, window_params = [{transform_indices = @transform_0, window_bounds = array<i64: 32, 2560>}, {transform_indices = @transform_1, window_bounds = array<i64: 32, 256>}, {transform_indices = @transform_2, window_bounds = array<i64: 32, 2560>}]} {
    %c0 = arith.constant 0 : index
    %c0_0 = arith.constant 0 : index
    %0 = vector.load %arg3[%c0, %c0_0] : memref<32x256xf32, #tpu.memory_space<vmem>>, vector<32x256xf32>
    %c0_1 = arith.constant 0 : index
    %c0_2 = arith.constant 0 : index
    %1 = vector.load %arg2[%c0_1, %c0_2] : memref<32x2560xf32, #tpu.memory_space<vmem>>, vector<32x256xf32>
    %2 = arith.addf %1, %0 : vector<32x256xf32>
    %c0_3 = arith.constant 0 : index
    %c0_4 = arith.constant 0 : index
    %3 = vector.load %arg4[%c0_3, %c0_4] : memref<32x2560xf32, #tpu.memory_space<vmem>>, vector<32x256xf32>
    tpu.vector_store %arg4[%c0_3, %c0_4], %2 {strides = array<i32>} : memref<32x2560xf32, #tpu.memory_space<vmem>>, vector<32x256xf32>,
    %c0_5 = arith.constant 0 : index
    %c256 = arith.constant 256 : index
    %4 = vector.load %arg2[%c0_5, %c256] : memref<32x2560xf32, #tpu.memory_space<vmem>>, vector<32x256xf32>
    %5 = arith.addf %4, %0 : vector<32x256xf32>
    %c0_6 = arith.constant 0 : index
    %c256_7 = arith.constant 256 : index
    %6 = vector.load %arg4[%c0_6, %c256_7] : memref<32x2560xf32, #tpu.memory_space<vmem>>, vector<32x256xf32>
    tpu.vector_store %arg4[%c0_6, %c256_7], %5 {strides = array<i32>} : memref<32x2560xf32, #tpu.memory_space<vmem>>, vector<32x256xf32>,
    %c0_8 = arith.constant 0 : index
    %c512 = arith.constant 512 : index
    %7 = vector.load %arg2[%c0_8, %c512] : memref<32x2560xf32, #tpu.memory_space<vmem>>, vector<32x256xf32>
    %8 = arith.addf %7, %0 : vector<32x256xf32>
    %c0_9 = arith.constant 0 : index
    %c512_10 = arith.constant 512 : index
    %9 = vector.load %arg4[%c0_9, %c512_10] : memref<32x2560xf32, #tpu.memory_space<vmem>>, vector<32x256xf32>
    tpu.vector_store %arg4[%c0_9, %c512_10], %8 {strides = array<i32>} : memref<32x2560xf32, #tpu.memory_space<vmem>>, vector<32x256xf32>,
    %c0_11 = arith.constant 0 : index
    %c768 = arith.constant 768 : index
    %10 = vector.load %arg2[%c0_11, %c768] : memref<32x2560xf32, #tpu.memory_space<vmem>>, vector<32x256xf32>
    %11 = arith.addf %10, %0 : vector<32x256xf32>
    %c0_12 = arith.constant 0 : index
    %c768_13 = arith.constant 768 : index
    %12 = vector.load %arg4[%c0_12, %c768_13] : memref<32x2560xf32, #tpu.memory_space<vmem>>, vector<32x256xf32>
    tpu.vector_store %arg4[%c0_12, %c768_13], %11 {strides = array<i32>} : memref<32x2560xf32, #tpu.memory_space<vmem>>, vector<32x256xf32>,
    %c0_14 = arith.constant 0 : index
    %c1024 = arith.constant 1024 : index
    %13 = vector.load %arg2[%c0_14, %c1024] : memref<32x2560xf32, #tpu.memory_space<vmem>>, vector<32x256xf32>
    %14 = arith.addf %13, %0 : vector<32x256xf32>
    %c0_15 = arith.constant 0 : index
    %c1024_16 = arith.constant 1024 : index
    %15 = vector.load %arg4[%c0_15, %c1024_16] : memref<32x2560xf32, #tpu.memory_space<vmem>>, vector<32x256xf32>
    tpu.vector_store %arg4[%c0_15, %c1024_16], %14 {strides = array<i32>} : memref<32x2560xf32, #tpu.memory_space<vmem>>, vector<32x256xf32>,
    %c0_17 = arith.constant 0 : index
    %c1280 = arith.constant 1280 : index
    %16 = vector.load %arg2[%c0_17, %c1280] : memref<32x2560xf32, #tpu.memory_space<vmem>>, vector<32x256xf32>
    %17 = arith.addf %16, %0 : vector<32x256xf32>
    %c0_18 = arith.constant 0 : index
    %c1280_19 = arith.constant 1280 : index
    %18 = vector.load %arg4[%c0_18, %c1280_19] : memref<32x2560xf32, #tpu.memory_space<vmem>>, vector<32x256xf32>
    tpu.vector_store %arg4[%c0_18, %c1280_19], %17 {strides = array<i32>} : memref<32x2560xf32, #tpu.memory_space<vmem>>, vector<32x256xf32>,
    %c0_20 = arith.constant 0 : index
    %c1536 = arith.constant 1536 : index
    %19 = vector.load %arg2[%c0_20, %c1536] : memref<32x2560xf32, #tpu.memory_space<vmem>>, vector<32x256xf32>
    %20 = arith.addf %19, %0 : vector<32x256xf32>
    %c0_21 = arith.constant 0 : index
    %c1536_22 = arith.constant 1536 : index
    %21 = vector.load %arg4[%c0_21, %c1536_22] : memref<32x2560xf32, #tpu.memory_space<vmem>>, vector<32x256xf32>
    tpu.vector_store %arg4[%c0_21, %c1536_22], %20 {strides = array<i32>} : memref<32x2560xf32, #tpu.memory_space<vmem>>, vector<32x256xf32>,
    %c0_23 = arith.constant 0 : index
    %c1792 = arith.constant 1792 : index
    %22 = vector.load %arg2[%c0_23, %c1792] : memref<32x2560xf32, #tpu.memory_space<vmem>>, vector<32x256xf32>
    %23 = arith.addf %22, %0 : vector<32x256xf32>
    %c0_24 = arith.constant 0 : index
    %c1792_25 = arith.constant 1792 : index
    %24 = vector.load %arg4[%c0_24, %c1792_25] : memref<32x2560xf32, #tpu.memory_space<vmem>>, vector<32x256xf32>
    tpu.vector_store %arg4[%c0_24, %c1792_25], %23 {strides = array<i32>} : memref<32x2560xf32, #tpu.memory_space<vmem>>, vector<32x256xf32>,
    %c0_26 = arith.constant 0 : index
    %c2048 = arith.constant 2048 : index
    %25 = vector.load %arg2[%c0_26, %c2048] : memref<32x2560xf32, #tpu.memory_space<vmem>>, vector<32x256xf32>
    %26 = arith.addf %25, %0 : vector<32x256xf32>
    %c0_27 = arith.constant 0 : index
    %c2048_28 = arith.constant 2048 : index
    %27 = vector.load %arg4[%c0_27, %c2048_28] : memref<32x2560xf32, #tpu.memory_space<vmem>>, vector<32x256xf32>
    tpu.vector_store %arg4[%c0_27, %c2048_28], %26 {strides = array<i32>} : memref<32x2560xf32, #tpu.memory_space<vmem>>, vector<32x256xf32>,
    %c0_29 = arith.constant 0 : index
    %c2304 = arith.constant 2304 : index
    %28 = vector.load %arg2[%c0_29, %c2304] : memref<32x2560xf32, #tpu.memory_space<vmem>>, vector<32x256xf32>
    %29 = arith.addf %28, %0 : vector<32x256xf32>
    %c0_30 = arith.constant 0 : index
    %c2304_31 = arith.constant 2304 : index
    %30 = vector.load %arg4[%c0_30, %c2304_31] : memref<32x2560xf32, #tpu.memory_space<vmem>>, vector<32x256xf32>
    tpu.vector_store %arg4[%c0_30, %c2304_31], %29 {strides = array<i32>} : memref<32x2560xf32, #tpu.memory_space<vmem>>, vector<32x256xf32>,
    return
  }
  func.func @transform_0(%arg0: i32, %arg1: i32) -> (i32, i32) {
    %c0_i32 = arith.constant 0 : i32
    return %arg0, %arg1 : i32, i32
  }
  func.func @transform_1(%arg0: i32, %arg1: i32) -> (i32, i32) {
    %c0_i32 = arith.constant 0 : i32
    %c0_i32_0 = arith.constant 0 : i32
    return %arg0, %c0_i32 : i32, i32
  }
  func.func @transform_2(%arg0: i32, %arg1: i32) -> (i32, i32) {
    %c0_i32 = arith.constant 0 : i32
    return %arg0, %arg1 : i32, i32
  }
}

</mosaic_0001>

<llo_original>
// kernel: positional_encoding_lut.1
$region0: #{positional_encoding_lut.1}
  #allocation0 [shape = 'u32[]', space=smem, size = 0x4, offset = 0x4, fixed_abs, tag = 'smem constant byte address 0x4 - core index']
  #allocation1 [shape = 'u32[144,128]{1,0:T(1,128)}', space=vmem, size = 0x12000, scoped, tag = 'internal scratch']
  %s0 = inlined_call_operand.vmem [shape: f32[60,2560], index: 0, kind: input, shape index: {}]
  %s1 = inlined_call_operand.vmem [shape: f32[60,256], index: 1, kind: input, shape index: {}]
  %s2 = inlined_call_operand.vmem [shape: f32[60,2560], index: 2, kind: output, shape index: {}]
  %s3 = sld [smem:[#allocation0]]
  $region41: #{positional_encoding_lut.1} parent=0
    _
  %s5 = ssub.s32 1, %s3
  %s6 = scalar_select 0, %s5, %s3
  loop: start=0, step=1, limit=4
  $region2: #{positional_encoding_lut.1} parent=0 // loop_pre_header
    _
  $region3: #{positional_encoding_lut.1} parent=0 // loop_header
    %s8 = sphi 0, %s12
    %p9 = scmp.ge.s32.totalorder %s8, 4
    %s15 = sphi 0, %s27
    %s16 = sphi 0, %s23
    %s17 = sphi 0, %s15
    %s18 = sphi 0, %s16
    %s19 = sphi 0, %s17
    %s20 = sphi 0, %s18
    %s32 = sphi 0, %s34
    %s35 = sphi 0, %s32
    %s36 = sphi 0, %s35
    %s52 = sphi 0, %s36
    %s58 = sphi 0, %s60
    %s61 = sphi 0, %s58
    %s62 = sphi 0, %s61
    %s78 = sphi 0, %s62
    %s86 = sphi 0, %s88
    %s89 = sphi 0, %s86
    %s90 = sphi 0, %s89
    %s106 = sphi 0, %s90
  $region4: #{positional_encoding_lut.1} parent=0 // loop_header_branch
    %11 = sbr.rel (%p9) target = $region8
  $region5: #{positional_encoding_lut.1} parent=0 // loop_body
    %s13 = ssub.s32 %s8, 1
    %s14 = ssub.s32 %s8, 2
    %s21 = sadd.s32 1, %s16
    %p22 = scmp.ge.s32.totalorder %s21, 1
    %s23 = scalar_select %p22, 0, %s21
    %s24 = sadd.s32 1, %s15
    %s25 = scalar_select %p22, %s24, %s15
    %p26 = scmp.ge.s32.totalorder %s25, 2
    %s27 = scalar_select %p26, 0, %s25
    %s28 = ssub.s32 %s15, %s27
    %s29 = ssub.s32 %s16, %s23
    %s30 = sor.u32 %s28, %s29
    %p31 = scmp.eq.s32.totalorder %s30, 0
    %s33 = sadd.s32 %s32, 1
    %s34 = scalar_select %p31, %s32, %s33
    %p37 = pneg %p31
    %p38 = scmp.eq.s32.totalorder %s8, 1
    %p39 = por %p37, %p38
    %p40 = scmp.ne.s32.totalorder %s32, %s35
    %p41 = scmp.eq.s32.totalorder %s8, 0
    %p42 = por %p40, %p41
    %p43 = scmp.ne.s32.totalorder %s32, %s35
    %p44 = scmp.eq.s32.totalorder %s13, 1
    %p45 = por %p43, %p44
    %p46 = scmp.ne.s32.totalorder %s35, %s36
    %p47 = scmp.eq.s32.totalorder %s13, 0
    %p48 = por %p46, %p47
    %p49 = scmp.ne.s32.totalorder %s35, %s36
    %p50 = scmp.eq.s32.totalorder %s14, 1
    %p51 = por %p49, %p50
    %p53 = scmp.ne.s32.totalorder %s36, %s52
    %p54 = scmp.eq.s32.totalorder %s14, 0
    %p55 = por %p53, %p54
    %s56 = ssub.s32 %s15, %s27
    %p57 = scmp.eq.s32.totalorder %s56, 0
    %s59 = sadd.s32 %s58, 1
    %s60 = scalar_select %p57, %s58, %s59
    %p63 = pneg %p57
    %p64 = scmp.eq.s32.totalorder %s8, 1
    %p65 = por %p63, %p64
    %p66 = scmp.ne.s32.totalorder %s58, %s61
    %p67 = scmp.eq.s32.totalorder %s8, 0
    %p68 = por %p66, %p67
    %p69 = scmp.ne.s32.totalorder %s58, %s61
    %p70 = scmp.eq.s32.totalorder %s13, 1
    %p71 = por %p69, %p70
    %p72 = scmp.ne.s32.totalorder %s61, %s62
    %p73 = scmp.eq.s32.totalorder %s13, 0
    %p74 = por %p72, %p73
    %p75 = scmp.ne.s32.totalorder %s61, %s62
    %p76 = scmp.eq.s32.totalorder %s14, 1
    %p77 = por %p75, %p76
    %p79 = scmp.ne.s32.totalorder %s62, %s78
    %p80 = scmp.eq.s32.totalorder %s14, 0
    %p81 = por %p79, %p80
    %s82 = ssub.s32 %s15, %s27
    %s83 = ssub.s32 %s16, %s23
    %s84 = sor.u32 %s82, %s83
    %p85 = scmp.eq.s32.totalorder %s84, 0
    %s87 = sadd.s32 %s86, 1
    %s88 = scalar_select %p85, %s86, %s87
    %p91 = pneg %p85
    %p92 = scmp.eq.s32.totalorder %s8, 1
    %p93 = por %p91, %p92
    %p94 = scmp.ne.s32.totalorder %s86, %s89
    %p95 = scmp.eq.s32.totalorder %s8, 0
    %p96 = por %p94, %p95
    %p97 = scmp.ne.s32.totalorder %s86, %s89
    %p98 = scmp.eq.s32.totalorder %s13, 1
    %p99 = por %p97, %p98
    %p100 = scmp.ne.s32.totalorder %s89, %s90
    %p101 = scmp.eq.s32.totalorder %s13, 0
    %p102 = por %p100, %p101
    %p103 = scmp.ne.s32.totalorder %s89, %s90
    %p104 = scmp.eq.s32.totalorder %s14, 1
    %p105 = por %p103, %p104
    %p107 = scmp.ne.s32.totalorder %s90, %s106
    %p108 = scmp.eq.s32.totalorder %s14, 0
    %p109 = por %p107, %p108
    %p110 = scmp.le.s32.totalorder 1, %s8
    %p111 = scmp.lt.s32.totalorder %s8, 3
    %p112 = pnand %p110, %p111
    %p113 = pneg %p112
    // Predicated region
    $region9: #{positional_encoding_lut.1} parent=5 // pred_check
      _
    $region10: #{positional_encoding_lut.1} parent=5 // pred_check_branch
      %115 = sbr.rel (%p112) target = $region12
    $region11: #{positional_encoding_lut.1} parent=5 // pred_region
      %s116 = ssub.s32 %s8, 1
    $region12: #{positional_encoding_lut.1} parent=5 // pred_fallthru
      _
    %p117 = scmp.lt.s32.totalorder %s8, 2
    // Predicated region
    $region13: #{positional_encoding_lut.1} parent=5 // pred_check
      %p118 = pneg %p117
    $region14: #{positional_encoding_lut.1} parent=5 // pred_check_branch
      %120 = sbr.rel (%p118) target = $region16
    $region15: #{positional_encoding_lut.1} parent=5 // pred_region
      // Predicated region
      $region17: #{positional_encoding_lut.1} parent=15 // pred_check
        %p121 = pneg %p42
      $region18: #{positional_encoding_lut.1} parent=15 // pred_check_branch
        %123 = sbr.rel (%p121) target = $region20
      $region19: #{positional_encoding_lut.1} parent=15 // pred_region
        %s124 = smul.u32 4, %s15
        %s125 = smul.u32 20, %s16
        %p126 = scmp.lt.s32.totalorder %s124, 7
        %s127 = scalar_select %p126, %s124, 7
        %p128 = scmp.lt.s32.totalorder %s125, 19
        %s129 = scalar_select %p128, %s125, 19
        %s130 = smul.addr %s127, 20
        %s131 = sadd.s32 %s129, %s130
        %s132 = smul.addr %s131, 8
        %s133 = scalar_lea.vmem %s0, %s132
        %s134 = smul.u32 4, %s15
        %s135 = smul.u32 20, %s16
      $region20: #{positional_encoding_lut.1} parent=15 // pred_fallthru
        _
      // Predicated region
      $region21: #{positional_encoding_lut.1} parent=15 // pred_check
        %p136 = pneg %p68
      $region22: #{positional_encoding_lut.1} parent=15 // pred_check_branch
        %138 = sbr.rel (%p136) target = $region24
      $region23: #{positional_encoding_lut.1} parent=15 // pred_region
        %s139 = smul.u32 4, %s15
        %p140 = scmp.lt.s32.totalorder %s139, 7
        %s141 = scalar_select %p140, %s139, 7
        %s142 = smul.addr %s141, 2
        %s143 = smul.addr %s142, 8
        %s144 = scalar_lea.vmem %s1, %s143
        %s145 = smul.u32 4, %s15
      $region24: #{positional_encoding_lut.1} parent=15 // pred_fallthru
        _
    $region16: #{positional_encoding_lut.1} parent=5 // pred_fallthru
      _
    %p146 = scmp.le.s32.totalorder 1, %s8
    %p147 = scmp.lt.s32.totalorder %s8, 3
    %p148 = pnand %p146, %p147
    %p149 = pneg %p148
    // Predicated region
    $region25: #{positional_encoding_lut.1} parent=5 // pred_check
      _
    $region26: #{positional_encoding_lut.1} parent=5 // pred_check_branch
      %151 = sbr.rel (%p148) target = $region28
    $region27: #{positional_encoding_lut.1} parent=5 // pred_region
      %s152 = ssub.s32 %s8, 1
      %s153 = smul.u32 4, %s17
      %s154 = smul.u32 20, %s18
      %p155 = scmp.lt.s32.totalorder %s153, 7
      %s156 = scalar_select %p155, %s153, 7
      %p157 = scmp.lt.s32.totalorder %s154, 19
      %s158 = scalar_select %p157, %s154, 19
      %s159 = smul.addr %s156, 20
      %s160 = sadd.s32 %s158, %s159
      %s161 = smul.addr %s160, 8
      %s162 = scalar_lea.vmem %s0, %s161
      %p163 = pneg %p48
      %p164 = pneg %p45
      %s165 = smul.u32 4, %s17
      %p166 = scmp.lt.s32.totalorder %s165, 7
      %s167 = scalar_select %p166, %s165, 7
      %s168 = smul.addr %s167, 2
      %s169 = smul.addr %s168, 8
      %s170 = scalar_lea.vmem %s1, %s169
      %p171 = pneg %p74
      %p172 = pneg %p71
      %p173 = pneg %p102
      %p174 = pneg %p99
      %s175 = smul.u32 4, %s17
      %s176 = smul.u32 20, %s18
      %p177 = scmp.lt.s32.totalorder %s175, 7
      %s178 = scalar_select %p177, %s175, 7
      %p179 = scmp.lt.s32.totalorder %s176, 19
      %s180 = scalar_select %p179, %s176, 19
      %s181 = smul.addr %s178, 20
      %s182 = sadd.s32 %s180, %s181
      %s183 = smul.addr %s182, 8
      %s184 = scalar_lea.vmem %s2, %s183
      %s185 = smul.u32 4, %s17
      %s186 = smul.u32 20, %s18
      %p187 = scmp.lt.s32.totalorder %s185, 7
      %s188 = scalar_select %p187, %s185, 7
      %p189 = scmp.lt.s32.totalorder %s186, 19
      %s190 = scalar_select %p189, %s186, 19
      %s191 = smul.addr %s188, 20
      %s192 = sadd.s32 %s190, %s191
      %s193 = smul.addr %s192, 8
      %s194 = scalar_lea.vmem %s0, %s193
      %s195 = smul.u32 4, %s17
      %s196 = smul.u32 20, %s18
      %s197 = smul.u32 4, %s17
      %p198 = scmp.lt.s32.totalorder %s197, 7
      %s199 = scalar_select %p198, %s197, 7
      %s200 = smul.addr %s199, 2
      %s201 = smul.addr %s200, 8
      %s202 = scalar_lea.vmem %s1, %s201
      %s203 = smul.u32 4, %s17
      %s204 = smul.u32 4, %s17
      %s205 = smul.u32 20, %s18
      %p206 = scmp.lt.s32.totalorder %s204, 7
      %s207 = scalar_select %p206, %s204, 7
      %p208 = scmp.lt.s32.totalorder %s205, 19
      %s209 = scalar_select %p208, %s205, 19
      %s210 = smul.addr %s207, 20
      %s211 = sadd.s32 %s209, %s210
      %s212 = smul.addr %s211, 8
      %s213 = scalar_lea.vmem %s2, %s212
      %s214 = smul.u32 4, %s17
      %s215 = smul.u32 20, %s18
      %v216 = vld [vmem:[%s202] sm:$0xff]
      %v217 = vld [vmem:[%s202 + $0x8] sm:$0xff]
      %v218 = vld [vmem:[%s202 + $0x10] sm:$0xff]
      %v219 = vld [vmem:[%s202 + $0x18] sm:$0xff]
      %v220 = vld [vmem:[%s202 + $0x20] sm:$0xff]
      %v221 = vld [vmem:[%s202 + $0x28] sm:$0xff]
      %v222 = vld [vmem:[%s202 + $0x30] sm:$0xff]
      %v223 = vld [vmem:[%s202 + $0x38] sm:$0xff]
      %v224 = vld [vmem:[%s194] sm:$0xff]
      %v225 = vld [vmem:[%s194 + $0x8] sm:$0xff]
      %v226 = vld [vmem:[%s194 + $0xa0] sm:$0xff]
      %v227 = vld [vmem:[%s194 + $0xa8] sm:$0xff]
      %v228 = vld [vmem:[%s194 + $0x140] sm:$0xff]
      %v229 = vld [vmem:[%s194 + $0x148] sm:$0xff]
      %v230 = vld [vmem:[%s194 + $0x1e0] sm:$0xff]
      %v231 = vld [vmem:[%s194 + $0x1e8] sm:$0xff]
      %v232 = vadd.f32 %v224, %v216
      %v233 = vadd.f32 %v225, %v217
      %v234 = vadd.f32 %v226, %v218
      %v235 = vadd.f32 %v227, %v219
      %v236 = vadd.f32 %v228, %v220
      %v237 = vadd.f32 %v229, %v221
      %v238 = vadd.f32 %v230, %v222
      %v239 = vadd.f32 %v231, %v223
      %240 = vst [vmem:[%s213] sm:$0xff] %v232
      %241 = vst [vmem:[%s213 + $0x8] sm:$0xff] %v233
      %242 = vst [vmem:[%s213 + $0xa0] sm:$0xff] %v234
      %243 = vst [vmem:[%s213 + $0xa8] sm:$0xff] %v235
      %244 = vst [vmem:[%s213 + $0x140] sm:$0xff] %v236
      %245 = vst [vmem:[%s213 + $0x148] sm:$0xff] %v237
      %246 = vst [vmem:[%s213 + $0x1e0] sm:$0xff] %v238
      %247 = vst [vmem:[%s213 + $0x1e8] sm:$0xff] %v239
      %v248 = vld [vmem:[%s194 + $0x10] sm:$0xff]
      %v249 = vld [vmem:[%s194 + $0x18] sm:$0xff]
      %v250 = vld [vmem:[%s194 + $0xb0] sm:$0xff]
      %v251 = vld [vmem:[%s194 + $0xb8] sm:$0xff]
      %v252 = vld [vmem:[%s194 + $0x150] sm:$0xff]
      %v253 = vld [vmem:[%s194 + $0x158] sm:$0xff]
      %v254 = vld [vmem:[%s194 + $0x1f0] sm:$0xff]
      %v255 = vld [vmem:[%s194 + $0x1f8] sm:$0xff]
      %v256 = vadd.f32 %v248, %v216
      %v257 = vadd.f32 %v249, %v217
      %v258 = vadd.f32 %v250, %v218
      %v259 = vadd.f32 %v251, %v219
      %v260 = vadd.f32 %v252, %v220
      %v261 = vadd.f32 %v253, %v221
      %v262 = vadd.f32 %v254, %v222
      %v263 = vadd.f32 %v255, %v223
      %264 = vst [vmem:[%s213 + $0x10] sm:$0xff] %v256
      %265 = vst [vmem:[%s213 + $0x18] sm:$0xff] %v257
      %266 = vst [vmem:[%s213 + $0xb0] sm:$0xff] %v258
      %267 = vst [vmem:[%s213 + $0xb8] sm:$0xff] %v259
      %268 = vst [vmem:[%s213 + $0x150] sm:$0xff] %v260
      %269 = vst [vmem:[%s213 + $0x158] sm:$0xff] %v261
      %270 = vst [vmem:[%s213 + $0x1f0] sm:$0xff] %v262
      %271 = vst [vmem:[%s213 + $0x1f8] sm:$0xff] %v263
      %v272 = vld [vmem:[%s194 + $0x20] sm:$0xff]
      %v273 = vld [vmem:[%s194 + $0x28] sm:$0xff]
      %v274 = vld [vmem:[%s194 + $0xc0] sm:$0xff]
      %v275 = vld [vmem:[%s194 + $0xc8] sm:$0xff]
      %v276 = vld [vmem:[%s194 + $0x160] sm:$0xff]
      %v277 = vld [vmem:[%s194 + $0x168] sm:$0xff]
      %v278 = vld [vmem:[%s194 + $0x200] sm:$0xff]
      %v279 = vld [vmem:[%s194 + $0x208] sm:$0xff]
      %v280 = vadd.f32 %v272, %v216
      %v281 = vadd.f32 %v273, %v217
      %v282 = vadd.f32 %v274, %v218
      %v283 = vadd.f32 %v275, %v219
      %v284 = vadd.f32 %v276, %v220
      %v285 = vadd.f32 %v277, %v221
      %v286 = vadd.f32 %v278, %v222
      %v287 = vadd.f32 %v279, %v223
      %288 = vst [vmem:[%s213 + $0x20] sm:$0xff] %v280
      %289 = vst [vmem:[%s213 + $0x28] sm:$0xff] %v281
      %290 = vst [vmem:[%s213 + $0xc0] sm:$0xff] %v282
      %291 = vst [vmem:[%s213 + $0xc8] sm:$0xff] %v283
      %292 = vst [vmem:[%s213 + $0x160] sm:$0xff] %v284
      %293 = vst [vmem:[%s213 + $0x168] sm:$0xff] %v285
      %294 = vst [vmem:[%s213 + $0x200] sm:$0xff] %v286
      %295 = vst [vmem:[%s213 + $0x208] sm:$0xff] %v287
      %v296 = vld [vmem:[%s194 + $0x30] sm:$0xff]
      %v297 = vld [vmem:[%s194 + $0x38] sm:$0xff]
      %v298 = vld [vmem:[%s194 + $0xd0] sm:$0xff]
      %v299 = vld [vmem:[%s194 + $0xd8] sm:$0xff]
      %v300 = vld [vmem:[%s194 + $0x170] sm:$0xff]
      %v301 = vld [vmem:[%s194 + $0x178] sm:$0xff]
      %v302 = vld [vmem:[%s194 + $0x210] sm:$0xff]
      %v303 = vld [vmem:[%s194 + $0x218] sm:$0xff]
      %v304 = vadd.f32 %v296, %v216
      %v305 = vadd.f32 %v297, %v217
      %v306 = vadd.f32 %v298, %v218
      %v307 = vadd.f32 %v299, %v219
      %v308 = vadd.f32 %v300, %v220
      %v309 = vadd.f32 %v301, %v221
      %v310 = vadd.f32 %v302, %v222
      %v311 = vadd.f32 %v303, %v223
      %312 = vst [vmem:[%s213 + $0x30] sm:$0xff] %v304
      %313 = vst [vmem:[%s213 + $0x38] sm:$0xff] %v305
      %314 = vst [vmem:[%s213 + $0xd0] sm:$0xff] %v306
      %315 = vst [vmem:[%s213 + $0xd8] sm:$0xff] %v307
      %316 = vst [vmem:[%s213 + $0x170] sm:$0xff] %v308
      %317 = vst [vmem:[%s213 + $0x178] sm:$0xff] %v309
      %318 = vst [vmem:[%s213 + $0x210] sm:$0xff] %v310
      %319 = vst [vmem:[%s213 + $0x218] sm:$0xff] %v311
      %v320 = vld [vmem:[%s194 + $0x40] sm:$0xff]
      %v321 = vld [vmem:[%s194 + $0x48] sm:$0xff]
      %v322 = vld [vmem:[%s194 + $0xe0] sm:$0xff]
      %v323 = vld [vmem:[%s194 + $0xe8] sm:$0xff]
      %v324 = vld [vmem:[%s194 + $0x180] sm:$0xff]
      %v325 = vld [vmem:[%s194 + $0x188] sm:$0xff]
      %v326 = vld [vmem:[%s194 + $0x220] sm:$0xff]
      %v327 = vld [vmem:[%s194 + $0x228] sm:$0xff]
      %v328 = vadd.f32 %v320, %v216
      %v329 = vadd.f32 %v321, %v217
      %v330 = vadd.f32 %v322, %v218
      %v331 = vadd.f32 %v323, %v219
      %v332 = vadd.f32 %v324, %v220
      %v333 = vadd.f32 %v325, %v221
      %v334 = vadd.f32 %v326, %v222
      %v335 = vadd.f32 %v327, %v223
      %336 = vst [vmem:[%s213 + $0x40] sm:$0xff] %v328
      %337 = vst [vmem:[%s213 + $0x48] sm:$0xff] %v329
      %338 = vst [vmem:[%s213 + $0xe0] sm:$0xff] %v330
      %339 = vst [vmem:[%s213 + $0xe8] sm:$0xff] %v331
      %340 = vst [vmem:[%s213 + $0x180] sm:$0xff] %v332
      %341 = vst [vmem:[%s213 + $0x188] sm:$0xff] %v333
      %342 = vst [vmem:[%s213 + $0x220] sm:$0xff] %v334
      %343 = vst [vmem:[%s213 + $0x228] sm:$0xff] %v335
      %v344 = vld [vmem:[%s194 + $0x50] sm:$0xff]
      %v345 = vld [vmem:[%s194 + $0x58] sm:$0xff]
      %v346 = vld [vmem:[%s194 + $0xf0] sm:$0xff]
      %v347 = vld [vmem:[%s194 + $0xf8] sm:$0xff]
      %v348 = vld [vmem:[%s194 + $0x190] sm:$0xff]
      %v349 = vld [vmem:[%s194 + $0x198] sm:$0xff]
      %v350 = vld [vmem:[%s194 + $0x230] sm:$0xff]
      %v351 = vld [vmem:[%s194 + $0x238] sm:$0xff]
      %v352 = vadd.f32 %v344, %v216
      %v353 = vadd.f32 %v345, %v217
      %v354 = vadd.f32 %v346, %v218
      %v355 = vadd.f32 %v347, %v219
      %v356 = vadd.f32 %v348, %v220
      %v357 = vadd.f32 %v349, %v221
      %v358 = vadd.f32 %v350, %v222
      %v359 = vadd.f32 %v351, %v223
      %360 = vst [vmem:[%s213 + $0x50] sm:$0xff] %v352
      %361 = vst [vmem:[%s213 + $0x58] sm:$0xff] %v353
      %362 = vst [vmem:[%s213 + $0xf0] sm:$0xff] %v354
      %363 = vst [vmem:[%s213 + $0xf8] sm:$0xff] %v355
      %364 = vst [vmem:[%s213 + $0x190] sm:$0xff] %v356
      %365 = vst [vmem:[%s213 + $0x198] sm:$0xff] %v357
      %366 = vst [vmem:[%s213 + $0x230] sm:$0xff] %v358
      %367 = vst [vmem:[%s213 + $0x238] sm:$0xff] %v359
      %v368 = vld [vmem:[%s194 + $0x60] sm:$0xff]
      %v369 = vld [vmem:[%s194 + $0x68] sm:$0xff]
      %v370 = vld [vmem:[%s194 + $0x100] sm:$0xff]
      %v371 = vld [vmem:[%s194 + $0x108] sm:$0xff]
      %v372 = vld [vmem:[%s194 + $0x1a0] sm:$0xff]
      %v373 = vld [vmem:[%s194 + $0x1a8] sm:$0xff]
      %v374 = vld [vmem:[%s194 + $0x240] sm:$0xff]
      %v375 = vld [vmem:[%s194 + $0x248] sm:$0xff]
      %v376 = vadd.f32 %v368, %v216
      %v377 = vadd.f32 %v369, %v217
      %v378 = vadd.f32 %v370, %v218
      %v379 = vadd.f32 %v371, %v219
      %v380 = vadd.f32 %v372, %v220
      %v381 = vadd.f32 %v373, %v221
      %v382 = vadd.f32 %v374, %v222
      %v383 = vadd.f32 %v375, %v223
      %384 = vst [vmem:[%s213 + $0x60] sm:$0xff] %v376
      %385 = vst [vmem:[%s213 + $0x68] sm:$0xff] %v377
      %386 = vst [vmem:[%s213 + $0x100] sm:$0xff] %v378
      %387 = vst [vmem:[%s213 + $0x108] sm:$0xff] %v379
      %388 = vst [vmem:[%s213 + $0x1a0] sm:$0xff] %v380
      %389 = vst [vmem:[%s213 + $0x1a8] sm:$0xff] %v381
      %390 = vst [vmem:[%s213 + $0x240] sm:$0xff] %v382
      %391 = vst [vmem:[%s213 + $0x248] sm:$0xff] %v383
      %v392 = vld [vmem:[%s194 + $0x70] sm:$0xff]
      %v393 = vld [vmem:[%s194 + $0x78] sm:$0xff]
      %v394 = vld [vmem:[%s194 + $0x110] sm:$0xff]
      %v395 = vld [vmem:[%s194 + $0x118] sm:$0xff]
      %v396 = vld [vmem:[%s194 + $0x1b0] sm:$0xff]
      %v397 = vld [vmem:[%s194 + $0x1b8] sm:$0xff]
      %v398 = vld [vmem:[%s194 + $0x250] sm:$0xff]
      %v399 = vld [vmem:[%s194 + $0x258] sm:$0xff]
      %v400 = vadd.f32 %v392, %v216
      %v401 = vadd.f32 %v393, %v217
      %v402 = vadd.f32 %v394, %v218
      %v403 = vadd.f32 %v395, %v219
      %v404 = vadd.f32 %v396, %v220
      %v405 = vadd.f32 %v397, %v221
      %v406 = vadd.f32 %v398, %v222
      %v407 = vadd.f32 %v399, %v223
      %408 = vst [vmem:[%s213 + $0x70] sm:$0xff] %v400
      %409 = vst [vmem:[%s213 + $0x78] sm:$0xff] %v401
      %410 = vst [vmem:[%s213 + $0x110] sm:$0xff] %v402
      %411 = vst [vmem:[%s213 + $0x118] sm:$0xff] %v403
      %412 = vst [vmem:[%s213 + $0x1b0] sm:$0xff] %v404
      %413 = vst [vmem:[%s213 + $0x1b8] sm:$0xff] %v405
      %414 = vst [vmem:[%s213 + $0x250] sm:$0xff] %v406
      %415 = vst [vmem:[%s213 + $0x258] sm:$0xff] %v407
      %v416 = vld [vmem:[%s194 + $0x80] sm:$0xff]
      %v417 = vld [vmem:[%s194 + $0x88] sm:$0xff]
      %v418 = vld [vmem:[%s194 + $0x120] sm:$0xff]
      %v419 = vld [vmem:[%s194 + $0x128] sm:$0xff]
      %v420 = vld [vmem:[%s194 + $0x1c0] sm:$0xff]
      %v421 = vld [vmem:[%s194 + $0x1c8] sm:$0xff]
      %v422 = vld [vmem:[%s194 + $0x260] sm:$0xff]
      %v423 = vld [vmem:[%s194 + $0x268] sm:$0xff]
      %v424 = vadd.f32 %v416, %v216
      %v425 = vadd.f32 %v417, %v217
      %v426 = vadd.f32 %v418, %v218
      %v427 = vadd.f32 %v419, %v219
      %v428 = vadd.f32 %v420, %v220
      %v429 = vadd.f32 %v421, %v221
      %v430 = vadd.f32 %v422, %v222
      %v431 = vadd.f32 %v423, %v223
      %432 = vst [vmem:[%s213 + $0x80] sm:$0xff] %v424
      %433 = vst [vmem:[%s213 + $0x88] sm:$0xff] %v425
      %434 = vst [vmem:[%s213 + $0x120] sm:$0xff] %v426
      %435 = vst [vmem:[%s213 + $0x128] sm:$0xff] %v427
      %436 = vst [vmem:[%s213 + $0x1c0] sm:$0xff] %v428
      %437 = vst [vmem:[%s213 + $0x1c8] sm:$0xff] %v429
      %438 = vst [vmem:[%s213 + $0x260] sm:$0xff] %v430
      %439 = vst [vmem:[%s213 + $0x268] sm:$0xff] %v431
      %v440 = vld [vmem:[%s194 + $0x90] sm:$0xff]
      %v441 = vld [vmem:[%s194 + $0x98] sm:$0xff]
      %v442 = vld [vmem:[%s194 + $0x130] sm:$0xff]
      %v443 = vld [vmem:[%s194 + $0x138] sm:$0xff]
      %v444 = vld [vmem:[%s194 + $0x1d0] sm:$0xff]
      %v445 = vld [vmem:[%s194 + $0x1d8] sm:$0xff]
      %v446 = vld [vmem:[%s194 + $0x270] sm:$0xff]
      %v447 = vld [vmem:[%s194 + $0x278] sm:$0xff]
      %v448 = vadd.f32 %v440, %v216
      %v449 = vadd.f32 %v441, %v217
      %v450 = vadd.f32 %v442, %v218
      %v451 = vadd.f32 %v443, %v219
      %v452 = vadd.f32 %v444, %v220
      %v453 = vadd.f32 %v445, %v221
      %v454 = vadd.f32 %v446, %v222
      %v455 = vadd.f32 %v447, %v223
      %456 = vst [vmem:[%s213 + $0x90] sm:$0xff] %v448
      %457 = vst [vmem:[%s213 + $0x98] sm:$0xff] %v449
      %458 = vst [vmem:[%s213 + $0x130] sm:$0xff] %v450
      %459 = vst [vmem:[%s213 + $0x138] sm:$0xff] %v451
      %460 = vst [vmem:[%s213 + $0x1d0] sm:$0xff] %v452
      %461 = vst [vmem:[%s213 + $0x1d8] sm:$0xff] %v453
      %462 = vst [vmem:[%s213 + $0x270] sm:$0xff] %v454
      %463 = vst [vmem:[%s213 + $0x278] sm:$0xff] %v455
      %s464 = smul.u32 4, %s17
      %s465 = smul.u32 20, %s18
      %p466 = scmp.lt.s32.totalorder %s464, 7
      %s467 = scalar_select %p466, %s464, 7
      %p468 = scmp.lt.s32.totalorder %s465, 19
      %s469 = scalar_select %p468, %s465, 19
      %s470 = smul.addr %s467, 20
      %s471 = sadd.s32 %s469, %s470
      %s472 = smul.addr %s471, 8
      %s473 = scalar_lea.vmem %s2, %s472
      // Predicated region
      $region29: #{positional_encoding_lut.1} parent=27 // pred_check
        %p474 = pneg %p99
      $region30: #{positional_encoding_lut.1} parent=27 // pred_check_branch
        %476 = sbr.rel (%p474) target = $region32
      $region31: #{positional_encoding_lut.1} parent=27 // pred_region
        %s477 = smul.u32 4, %s17
        %s478 = smul.u32 20, %s18
      $region32: #{positional_encoding_lut.1} parent=27 // pred_fallthru
        _
    $region28: #{positional_encoding_lut.1} parent=5 // pred_fallthru
      _
    %p479 = scmp.le.s32.totalorder 2, %s8
    // Predicated region
    $region33: #{positional_encoding_lut.1} parent=5 // pred_check
      %p480 = pneg %p479
    $region34: #{positional_encoding_lut.1} parent=5 // pred_check_branch
      %482 = sbr.rel (%p480) target = $region36
    $region35: #{positional_encoding_lut.1} parent=5 // pred_region
      %s483 = ssub.s32 %s8, 2
      // Predicated region
      $region37: #{positional_encoding_lut.1} parent=35 // pred_check
        %p484 = pneg %p105
      $region38: #{positional_encoding_lut.1} parent=35 // pred_check_branch
        %486 = sbr.rel (%p484) target = $region40
      $region39: #{positional_encoding_lut.1} parent=35 // pred_region
        %s487 = smul.u32 4, %s19
        %s488 = smul.u32 20, %s20
        %p489 = scmp.lt.s32.totalorder %s487, 7
        %s490 = scalar_select %p489, %s487, 7
        %p491 = scmp.lt.s32.totalorder %s488, 19
        %s492 = scalar_select %p491, %s488, 19
        %s493 = smul.addr %s490, 20
        %s494 = sadd.s32 %s492, %s493
        %s495 = smul.addr %s494, 8
        %s496 = scalar_lea.vmem %s2, %s495
      $region40: #{positional_encoding_lut.1} parent=35 // pred_fallthru
        _
    $region36: #{positional_encoding_lut.1} parent=5 // pred_fallthru
      _
  $region6: #{positional_encoding_lut.1} parent=0 // loop_footer
    %s12 = sadd.s32 1, %s8
  $region7: #{positional_encoding_lut.1} parent=0 // loop_footer_branch
    %7 = sbr.rel target = $region3
  $region8: #{positional_encoding_lut.1} parent=0 // loop_exit
    _

</llo_original>
